<compile_context>
chip_gen: v6e
topology: v6e:2x2x1
jax: 0.10.0
libtpu: 0.0.40
codegen_flags: <defaults>
</compile_context>

<pallas_src>
import math

import jax
import jax.numpy as jnp
from jax.experimental import pallas as pl
from jax.experimental.pallas import tpu as pltpu


def _data_embedding_kernel(x_ref, wv_ref, add_ref, o_ref):
    # x_ref:   (tile_rows, F_total)  flattened (t, n) rows of raw input features
    # wv_ref:  (F_total, D)          value-embedding weight, zero rows for the
    #                                channels beyond feature_dim
    # add_ref: (tile_rows, D)        precomputed pe[t] + lap_mx@Ws + bs + bv
    # o_ref:   (tile_rows, D)
    val = jnp.dot(x_ref[...], wv_ref[...], preferred_element_type=jnp.float32)
    o_ref[...] = (val + add_ref[...]).astype(o_ref.dtype)


def _choose_row_tile(rows, max_rows=1024):
    """Largest row tile that is a divisor of `rows`, a multiple of 8 and <= max_rows.

    Falls back to the full extent (always legal for BlockSpec) if none exists.
    """
    if rows <= max_rows:
        return rows
    for cand in range(max_rows, 7, -1):
        if rows % cand == 0 and cand % 8 == 0:
            return cand
    return rows


def data_embedding_forward(x_full, lap_mx, params, feature_dim, *, max_tile_rows=1024):
    """x_full: (B, T, N, F_total) float32; lap_mx: (N, L) float32 -> (B, T, N, D)."""
    wv, bv, ws, bs, pe = (params["wv"], params["bv"],
                          params["ws"], params["bs"], params["pe"])
    B, T, N, F_total = x_full.shape
    F = feature_dim
    D = wv.shape[-1]

    if T > pe.shape[0]:
        raise ValueError(
            f"sequence length T={T} exceeds positional-encoding max_len={pe.shape[0]}")

    # --- hoisted, batch-invariant precompute (tiny, done once in plain JAX) ---
    # Zero-pad Wv so x_full @ wv_pad == x_full[..., :F] @ wv  (kills the HBM slice copy).
    wv_pad = jnp.zeros((F_total, D), jnp.float32).at[:F, :].set(wv)
    # Spatial embedding + both linear biases + positional encoding folded into one table.
    spatial = lap_mx @ ws + bs + bv                                # (N, D)
    add = (pe[:T][:, None, :] + spatial[None, :, :]).reshape(T * N, D)  # (T*N, D)

    # --- flatten (T, N) -> rows; contiguous reshape, no HBM traffic ---
    rows = T * N
    x2 = x_full.reshape(B, rows, F_total)
    tile_rows = _choose_row_tile(rows, max_tile_rows)
    grid = (B, rows // tile_rows)

    out = pl.pallas_call(
        _data_embedding_kernel,
        out_shape=jax.ShapeDtypeStruct((B, rows, D), jnp.float32),
        grid_spec=pl.GridSpec(
            grid=grid,
            in_specs=[
                # raw features, one big row tile per step
                pl.BlockSpec((pl.Squeezed(), tile_rows, F_total),
                             lambda b, m: (b, m, 0)),
                # padded value-embedding weight: constant block, stays resident
                pl.BlockSpec((F_total, D), lambda b, m: (0, 0)),
                # fused additive table (pe + spatial + biases), indexed by row tile only
                pl.BlockSpec((tile_rows, D), lambda b, m: (m, 0)),
            ],
            out_specs=pl.BlockSpec((pl.Squeezed(), tile_rows, D),
                                   lambda b, m: (b, m, 0)),
        ),
        compiler_params=pltpu.CompilerParams(
            # No accumulation across grid steps -> both axes parallel (megacore-friendly).
            dimension_semantics=("parallel", "parallel"),
            # Explicit budget: well under v7x's 64 MiB physical VMEM, above defaults.
            vmem_limit_bytes=48 * 1024 * 1024,
        ),
    )(x2, wv_pad, add)

    return out.reshape(B, T, N, D)


def make_positional_encoding(embed_dim, max_len=100):
    # Mirrors the PyTorch PositionalEncoding buffer construction.
    position = jnp.arange(0, max_len, dtype=jnp.float32)[:, None]          # (max_len, 1)
    div_term = jnp.exp(jnp.arange(0, embed_dim, 2, dtype=jnp.float32)
                       * -(math.log(10000.0) / embed_dim))                 # (D/2,)
    pe = jnp.zeros((max_len, embed_dim), dtype=jnp.float32)
    pe = pe.at[:, 0::2].set(jnp.sin(position * div_term))
    pe = pe.at[:, 1::2].set(jnp.cos(position * div_term))
    return pe                                                              # (max_len, D)


def init_params(key, feature_dim, embed_dim, lape_dim, max_len=100):
    k1, k2, k3, k4 = jax.random.split(key, 4)
    # deterministic synthetic init (uniform, roughly like nn.Linear defaults)
    lim_v = 1.0 / math.sqrt(feature_dim)
    lim_s = 1.0 / math.sqrt(lape_dim)
    return {
        "wv": jax.random.uniform(k1, (feature_dim, embed_dim), jnp.float32, -lim_v, lim_v),
        "bv": jax.random.uniform(k2, (embed_dim,), jnp.float32, -lim_v, lim_v),
        "ws": jax.random.uniform(k3, (lape_dim, embed_dim), jnp.float32, -lim_s, lim_s),
        "bs": jax.random.uniform(k4, (embed_dim,), jnp.float32, -lim_s, lim_s),
        "pe": make_positional_encoding(embed_dim, max_len=max_len),
    }


def reference_forward(x_full, lap_mx, params, feature_dim):
    # Pure-JAX reference of the PyTorch forward (drop=0 -> identity dropout).
    x = x_full[..., :feature_dim]
    val = jnp.einsum("btnf,fd->btnd", x, params["wv"]) + params["bv"]
    T = x_full.shape[1]
    pe = params["pe"][:T][None, :, None, :]                          # (1, T, 1, D)
    spa = (lap_mx @ params["ws"] + params["bs"])[None, None, :, :]   # (1, 1, N, D)
    return val + pe + spa


if __name__ == "__main__":
    # Small shapes consistent with the module's forward.
    B, T, N = 2, 8, 16
    feature_dim, embed_dim, lape_dim = 4, 32, 8
    F_total = feature_dim + 2   # extra channels to exercise the [:feature_dim] behavior

    key = jax.random.PRNGKey(0)
    kx, kl, kp = jax.random.split(key, 3)
    x_full = jax.random.normal(kx, (B, T, N, F_total), jnp.float32)
    lap_mx = jax.random.normal(kl, (N, lape_dim), jnp.float32)
    params = init_params(kp, feature_dim, embed_dim, lape_dim)

    out = data_embedding_forward(x_full, lap_mx, params, feature_dim)
    out = jax.block_until_ready(out)

    ref = reference_forward(x_full, lap_mx, params, feature_dim)
    assert out.shape == (B, T, N, embed_dim)
    assert jnp.allclose(out, ref, atol=1e-5, rtol=1e-5), "mismatch vs. JAX reference"

    print("KERNEL_OK")
</pallas_src>

<mosaic_0001>
module attributes {stable_mosaic.version = 11 : i64} {
  func.func @_data_embedding_kernel(%arg0: i32, %arg1: i32, %arg2: memref<1x128x6xf32, #tpu.memory_space<vmem>>, %arg3: memref<6x32xf32, #tpu.memory_space<vmem>>, %arg4: memref<128x32xf32, #tpu.memory_space<vmem>>, %arg5: memref<1x128x32xf32, #tpu.memory_space<vmem>>) attributes {dimension_semantics = [#tpu.dimension_semantics<parallel>, #tpu.dimension_semantics<parallel>], iteration_bounds = array<i64: 2, 1>, scalar_prefetch = 0 : i64, scratch_operands = 0 : i64, tpu.core_type = #tpu.core_type<tc>, window_params = [{transform_indices = @transform_0, window_bounds = array<i64: 1, 128, 6>}, {pipeline_mode = #tpu.pipeline_mode<synchronous>, transform_indices = @transform_1, window_bounds = array<i64: 6, 32>}, {transform_indices = @transform_2, window_bounds = array<i64: 128, 32>}, {transform_indices = @transform_3, window_bounds = array<i64: 1, 128, 32>}]} {
    %c0 = arith.constant 0 : index
    %c0_0 = arith.constant 0 : index
    %c0_1 = arith.constant 0 : index
    %0 = vector.load %arg2[%c0, %c0_0, %c0_1] : memref<1x128x6xf32, #tpu.memory_space<vmem>>, vector<1x128x6xf32>
    %1 = vector.shape_cast %0 : vector<1x128x6xf32> to vector<128x6xf32>
    %c0_2 = arith.constant 0 : index
    %c0_3 = arith.constant 0 : index
    %2 = vector.load %arg3[%c0_2, %c0_3] : memref<6x32xf32, #tpu.memory_space<vmem>>, vector<6x32xf32>
    %cst = arith.constant dense<0.000000e+00> : vector<128x32xf32>
    %3 = tpu.matmul %1, %2, %cst {dimension_numbers = #tpu.dot_dimension_numbers<[1], [0], [0], [1], [0, 0, 1, 1], [], []>} : vector<128x6xf32>, vector<6x32xf32>, vector<128x32xf32> -> vector<128x32xf32>
    %c0_4 = arith.constant 0 : index
    %c0_5 = arith.constant 0 : index
    %4 = vector.load %arg4[%c0_4, %c0_5] : memref<128x32xf32, #tpu.memory_space<vmem>>, vector<128x32xf32>
    %5 = arith.addf %3, %4 : vector<128x32xf32>
    %c0_6 = arith.constant 0 : index
    %c0_7 = arith.constant 0 : index
    %c0_8 = arith.constant 0 : index
    %6 = vector.load %arg5[%c0_6, %c0_7, %c0_8] : memref<1x128x32xf32, #tpu.memory_space<vmem>>, vector<1x128x32xf32>
    %7 = vector.shape_cast %6 : vector<1x128x32xf32> to vector<128x32xf32>
    %8 = vector.shape_cast %5 : vector<128x32xf32> to vector<1x128x32xf32>
    tpu.vector_store %arg5[%c0_6, %c0_7, %c0_8], %8 {strides = array<i32>} : memref<1x128x32xf32, #tpu.memory_space<vmem>>, vector<1x128x32xf32>,
    return
  }
  func.func @transform_0(%arg0: i32, %arg1: i32) -> (i32, i32, i32) {
    %c0_i32 = arith.constant 0 : i32
    %c0_i32_0 = arith.constant 0 : i32
    return %arg0, %arg1, %c0_i32 : i32, i32, i32
  }
  func.func @transform_1(%arg0: i32, %arg1: i32) -> (i32, i32) {
    %c0_i32 = arith.constant 0 : i32
    %c0_i32_0 = arith.constant 0 : i32
    %c0_i32_1 = arith.constant 0 : i32
    return %c0_i32, %c0_i32_0 : i32, i32
  }
  func.func @transform_2(%arg0: i32, %arg1: i32) -> (i32, i32) {
    %c0_i32 = arith.constant 0 : i32
    %c0_i32_0 = arith.constant 0 : i32
    return %arg1, %c0_i32 : i32, i32
  }
  func.func @transform_3(%arg0: i32, %arg1: i32) -> (i32, i32, i32) {
    %c0_i32 = arith.constant 0 : i32
    %c0_i32_0 = arith.constant 0 : i32
    return %arg0, %arg1, %c0_i32 : i32, i32, i32
  }
}

</mosaic_0001>

<llo_original>
// kernel: tpu_custom_call.1
$region0: #{tpu_custom_call.1}
  #allocation0 [shape = 'u32[]', space=smem, size = 0x4, offset = 0x4, fixed_abs, tag = 'smem constant byte address 0x4 - core index']
  #allocation1 [shape = 'u32[144,128]{1,0:T(1,128)}', space=vmem, size = 0x12000, scoped, tag = 'internal scratch']
  %s0 = inlined_call_operand.vmem [shape: f32[2,128,6], index: 0, kind: input, shape index: {}]
  %s1 = inlined_call_operand.vmem [shape: f32[6,32], index: 1, kind: input, shape index: {}]
  %s2 = inlined_call_operand.vmem [shape: f32[128,32], index: 2, kind: input, shape index: {}]
  %s3 = inlined_call_operand.vmem [shape: f32[2,128,32], index: 3, kind: output, shape index: {}]
  %s4 = sld [smem:[#allocation0]]
  $region45: #{tpu_custom_call.1} parent=0
    _
  %s6 = ssub.s32 1, %s4
  %s7 = scalar_select 0, %s6, %s4
  loop: start=0, step=1, limit=4
  $region2: #{tpu_custom_call.1} parent=0 // loop_pre_header
    _
  $region3: #{tpu_custom_call.1} parent=0 // loop_header
    %s9 = sphi 0, %s13
    %p10 = scmp.ge.s32.totalorder %s9, 4
    %s16 = sphi 0, %s28
    %s17 = sphi 0, %s24
    %s18 = sphi 0, %s16
    %s19 = sphi 0, %s17
    %s20 = sphi 0, %s18
    %s21 = sphi 0, %s19
    %s33 = sphi 0, %s35
    %s36 = sphi 0, %s33
    %s37 = sphi 0, %s36
    %s53 = sphi 0, %s37
    %s57 = sphi 0, %s57
    %s59 = sphi 0, %s57
    %s60 = sphi 0, %s59
    %s74 = sphi 0, %s60
    %s80 = sphi 0, %s82
    %s83 = sphi 0, %s80
    %s84 = sphi 0, %s83
    %s100 = sphi 0, %s84
    %s108 = sphi 0, %s110
    %s111 = sphi 0, %s108
    %s112 = sphi 0, %s111
    %s128 = sphi 0, %s112
  $region4: #{tpu_custom_call.1} parent=0 // loop_header_branch
    %12 = sbr.rel (%p10) target = $region8
  $region5: #{tpu_custom_call.1} parent=0 // loop_body
    %s14 = ssub.s32 %s9, 1
    %s15 = ssub.s32 %s9, 2
    %s22 = sadd.s32 1, %s17
    %p23 = scmp.ge.s32.totalorder %s22, 1
    %s24 = scalar_select %p23, 0, %s22
    %s25 = sadd.s32 1, %s16
    %s26 = scalar_select %p23, %s25, %s16
    %p27 = scmp.ge.s32.totalorder %s26, 2
    %s28 = scalar_select %p27, 0, %s26
    %s29 = ssub.s32 %s16, %s28
    %s30 = ssub.s32 %s17, %s24
    %s31 = sor.u32 %s29, %s30
    %p32 = scmp.eq.s32.totalorder %s31, 0
    %s34 = sadd.s32 %s33, 1
    %s35 = scalar_select %p32, %s33, %s34
    %p38 = pneg %p32
    %p39 = scmp.eq.s32.totalorder %s9, 1
    %p40 = por %p38, %p39
    %p41 = scmp.ne.s32.totalorder %s33, %s36
    %p42 = scmp.eq.s32.totalorder %s9, 0
    %p43 = por %p41, %p42
    %p44 = scmp.ne.s32.totalorder %s33, %s36
    %p45 = scmp.eq.s32.totalorder %s14, 1
    %p46 = por %p44, %p45
    %p47 = scmp.ne.s32.totalorder %s36, %s37
    %p48 = scmp.eq.s32.totalorder %s14, 0
    %p49 = por %p47, %p48
    %p50 = scmp.ne.s32.totalorder %s36, %s37
    %p51 = scmp.eq.s32.totalorder %s15, 1
    %p52 = por %p50, %p51
    %p54 = scmp.ne.s32.totalorder %s37, %s53
    %p55 = scmp.eq.s32.totalorder %s15, 0
    %p56 = por %p54, %p55
    %s58 = sadd.s32 %s57, 1
    %p61 = scmp.eq.s32.totalorder %s9, 1
    %p62 = scmp.ne.s32.totalorder %s57, %s59
    %p63 = scmp.eq.s32.totalorder %s9, 0
    %p64 = por %p62, %p63
    %p65 = scmp.ne.s32.totalorder %s57, %s59
    %p66 = scmp.eq.s32.totalorder %s14, 1
    %p67 = por %p65, %p66
    %p68 = scmp.ne.s32.totalorder %s59, %s60
    %p69 = scmp.eq.s32.totalorder %s14, 0
    %p70 = por %p68, %p69
    %p71 = scmp.ne.s32.totalorder %s59, %s60
    %p72 = scmp.eq.s32.totalorder %s15, 1
    %p73 = por %p71, %p72
    %p75 = scmp.ne.s32.totalorder %s60, %s74
    %p76 = scmp.eq.s32.totalorder %s15, 0
    %p77 = por %p75, %p76
    %s78 = ssub.s32 %s17, %s24
    %p79 = scmp.eq.s32.totalorder %s78, 0
    %s81 = sadd.s32 %s80, 1
    %s82 = scalar_select %p79, %s80, %s81
    %p85 = pneg %p79
    %p86 = scmp.eq.s32.totalorder %s9, 1
    %p87 = por %p85, %p86
    %p88 = scmp.ne.s32.totalorder %s80, %s83
    %p89 = scmp.eq.s32.totalorder %s9, 0
    %p90 = por %p88, %p89
    %p91 = scmp.ne.s32.totalorder %s80, %s83
    %p92 = scmp.eq.s32.totalorder %s14, 1
    %p93 = por %p91, %p92
    %p94 = scmp.ne.s32.totalorder %s83, %s84
    %p95 = scmp.eq.s32.totalorder %s14, 0
    %p96 = por %p94, %p95
    %p97 = scmp.ne.s32.totalorder %s83, %s84
    %p98 = scmp.eq.s32.totalorder %s15, 1
    %p99 = por %p97, %p98
    %p101 = scmp.ne.s32.totalorder %s84, %s100
    %p102 = scmp.eq.s32.totalorder %s15, 0
    %p103 = por %p101, %p102
    %s104 = ssub.s32 %s16, %s28
    %s105 = ssub.s32 %s17, %s24
    %s106 = sor.u32 %s104, %s105
    %p107 = scmp.eq.s32.totalorder %s106, 0
    %s109 = sadd.s32 %s108, 1
    %s110 = scalar_select %p107, %s108, %s109
    %p113 = pneg %p107
    %p114 = scmp.eq.s32.totalorder %s9, 1
    %p115 = por %p113, %p114
    %p116 = scmp.ne.s32.totalorder %s108, %s111
    %p117 = scmp.eq.s32.totalorder %s9, 0
    %p118 = por %p116, %p117
    %p119 = scmp.ne.s32.totalorder %s108, %s111
    %p120 = scmp.eq.s32.totalorder %s14, 1
    %p121 = por %p119, %p120
    %p122 = scmp.ne.s32.totalorder %s111, %s112
    %p123 = scmp.eq.s32.totalorder %s14, 0
    %p124 = por %p122, %p123
    %p125 = scmp.ne.s32.totalorder %s111, %s112
    %p126 = scmp.eq.s32.totalorder %s15, 1
    %p127 = por %p125, %p126
    %p129 = scmp.ne.s32.totalorder %s112, %s128
    %p130 = scmp.eq.s32.totalorder %s15, 0
    %p131 = por %p129, %p130
    %p132 = scmp.le.s32.totalorder 1, %s9
    %p133 = scmp.lt.s32.totalorder %s9, 3
    %p134 = pnand %p132, %p133
    %p135 = pneg %p134
    // Predicated region
    $region9: #{tpu_custom_call.1} parent=5 // pred_check
      _
    $region10: #{tpu_custom_call.1} parent=5 // pred_check_branch
      %137 = sbr.rel (%p134) target = $region12
    $region11: #{tpu_custom_call.1} parent=5 // pred_region
      %s138 = ssub.s32 %s9, 1
      // Predicated region
      $region13: #{tpu_custom_call.1} parent=11 // pred_check
        %p139 = pneg %p70
      $region14: #{tpu_custom_call.1} parent=11 // pred_check_branch
        %141 = sbr.rel (%p139) target = $region16
      $region15: #{tpu_custom_call.1} parent=11 // pred_region
        _
      $region16: #{tpu_custom_call.1} parent=11 // pred_fallthru
        _
      // Predicated region
      $region17: #{tpu_custom_call.1} parent=11 // pred_check
        %p142 = pneg %p96
      $region18: #{tpu_custom_call.1} parent=11 // pred_check_branch
        %144 = sbr.rel (%p142) target = $region20
      $region19: #{tpu_custom_call.1} parent=11 // pred_region
        %s145 = smul.u32 16, %s19
        %p146 = scmp.lt.s32.totalorder %s145, 15
        %s147 = scalar_select %p146, %s145, 15
        %s148 = smul.addr %s147, 8
        %s149 = scalar_lea.vmem %s2, %s148
        %s150 = smul.u32 16, %s19
      $region20: #{tpu_custom_call.1} parent=11 // pred_fallthru
        _
    $region12: #{tpu_custom_call.1} parent=5 // pred_fallthru
      _
    %p151 = scmp.lt.s32.totalorder %s9, 2
    // Predicated region
    $region21: #{tpu_custom_call.1} parent=5 // pred_check
      %p152 = pneg %p151
    $region22: #{tpu_custom_call.1} parent=5 // pred_check_branch
      %154 = sbr.rel (%p152) target = $region24
    $region23: #{tpu_custom_call.1} parent=5 // pred_region
      // Predicated region
      $region25: #{tpu_custom_call.1} parent=23 // pred_check
        %p155 = pneg %p43
      $region26: #{tpu_custom_call.1} parent=23 // pred_check_branch
        %157 = sbr.rel (%p155) target = $region28
      $region27: #{tpu_custom_call.1} parent=23 // pred_region
        %s158 = smul.u32 16, %s17
        %p159 = scmp.lt.s32.totalorder %s16, 1
        %s160 = scalar_select %p159, %s16, 1
        %p161 = scmp.lt.s32.totalorder %s158, 15
        %s162 = scalar_select %p161, %s158, 15
        %s163 = smul.addr %s160, 16
        %s164 = sadd.s32 %s162, %s163
        %s165 = smul.addr %s164, 8
        %s166 = scalar_lea.vmem %s0, %s165
        %s167 = smul.u32 16, %s17
      $region28: #{tpu_custom_call.1} parent=23 // pred_fallthru
        _
    $region24: #{tpu_custom_call.1} parent=5 // pred_fallthru
      _
    %p168 = scmp.le.s32.totalorder 1, %s9
    %p169 = scmp.lt.s32.totalorder %s9, 3
    %p170 = pnand %p168, %p169
    %p171 = pneg %p170
    // Predicated region
    $region29: #{tpu_custom_call.1} parent=5 // pred_check
      _
    $region30: #{tpu_custom_call.1} parent=5 // pred_check_branch
      %173 = sbr.rel (%p170) target = $region32
    $region31: #{tpu_custom_call.1} parent=5 // pred_region
      %s174 = ssub.s32 %s9, 1
      %s175 = smul.u32 16, %s19
      %p176 = scmp.lt.s32.totalorder %s18, 1
      %s177 = scalar_select %p176, %s18, 1
      %p178 = scmp.lt.s32.totalorder %s175, 15
      %s179 = scalar_select %p178, %s175, 15
      %s180 = smul.addr %s177, 16
      %s181 = sadd.s32 %s179, %s180
      %s182 = smul.addr %s181, 8
      %s183 = scalar_lea.vmem %s0, %s182
      %p184 = pneg %p49
      %p185 = pneg %p46
      %p186 = pneg %p70
      %p187 = pneg %p67
      %s188 = smul.u32 16, %s19
      %p189 = scmp.lt.s32.totalorder %s188, 15
      %s190 = scalar_select %p189, %s188, 15
      %s191 = smul.addr %s190, 8
      %s192 = scalar_lea.vmem %s2, %s191
      %p193 = pneg %p96
      %p194 = pneg %p93
      %p195 = pneg %p124
      %p196 = pneg %p121
      %s197 = smul.u32 16, %s19
      %p198 = scmp.lt.s32.totalorder %s18, 1
      %s199 = scalar_select %p198, %s18, 1
      %p200 = scmp.lt.s32.totalorder %s197, 15
      %s201 = scalar_select %p200, %s197, 15
      %s202 = smul.addr %s199, 16
      %s203 = sadd.s32 %s201, %s202
      %s204 = smul.addr %s203, 8
      %s205 = scalar_lea.vmem %s3, %s204
      %s206 = smul.u32 16, %s19
      %p207 = scmp.lt.s32.totalorder %s18, 1
      %s208 = scalar_select %p207, %s18, 1
      %p209 = scmp.lt.s32.totalorder %s206, 15
      %s210 = scalar_select %p209, %s206, 15
      %s211 = smul.addr %s208, 16
      %s212 = sadd.s32 %s210, %s211
      %s213 = smul.addr %s212, 8
      %s214 = scalar_lea.vmem %s0, %s213
      %s215 = smul.u32 16, %s19
      %s216 = smul.u32 16, %s19
      %p217 = scmp.lt.s32.totalorder %s216, 15
      %s218 = scalar_select %p217, %s216, 15
      %s219 = smul.addr %s218, 8
      %s220 = scalar_lea.vmem %s2, %s219
      %s221 = smul.u32 16, %s19
      %s222 = smul.u32 16, %s19
      %p223 = scmp.lt.s32.totalorder %s18, 1
      %s224 = scalar_select %p223, %s18, 1
      %p225 = scmp.lt.s32.totalorder %s222, 15
      %s226 = scalar_select %p225, %s222, 15
      %s227 = smul.addr %s224, 16
      %s228 = sadd.s32 %s226, %s227
      %s229 = smul.addr %s228, 8
      %s230 = scalar_lea.vmem %s3, %s229
      %s231 = smul.u32 16, %s19
      %v232 = vld [vmem:[%s214] sm:$0xff]
      %v233 = vld [vmem:[%s214 + $0x8] sm:$0xff]
      %v234 = vld [vmem:[%s214 + $0x10] sm:$0xff]
      %v235 = vld [vmem:[%s214 + $0x18] sm:$0xff]
      %v236 = vld [vmem:[%s214 + $0x20] sm:$0xff]
      %v237 = vld [vmem:[%s214 + $0x28] sm:$0xff]
      %v238 = vld [vmem:[%s214 + $0x30] sm:$0xff]
      %v239 = vld [vmem:[%s214 + $0x38] sm:$0xff]
      %v240 = vld [vmem:[%s214 + $0x40] sm:$0xff]
      %v241 = vld [vmem:[%s214 + $0x48] sm:$0xff]
      %v242 = vld [vmem:[%s214 + $0x50] sm:$0xff]
      %v243 = vld [vmem:[%s214 + $0x58] sm:$0xff]
      %v244 = vld [vmem:[%s214 + $0x60] sm:$0xff]
      %v245 = vld [vmem:[%s214 + $0x68] sm:$0xff]
      %v246 = vld [vmem:[%s214 + $0x70] sm:$0xff]
      %v247 = vld [vmem:[%s214 + $0x78] sm:$0xff]
      %v248 = vld [vmem:[%s1] sm:$0x3f]
      %v249 = vld [vmem:[%s220] sm:$0xff]
      %v250 = vld [vmem:[%s220 + $0x8] sm:$0xff]
      %v251 = vld [vmem:[%s220 + $0x10] sm:$0xff]
      %v252 = vld [vmem:[%s220 + $0x18] sm:$0xff]
      %v253 = vld [vmem:[%s220 + $0x20] sm:$0xff]
      %v254 = vld [vmem:[%s220 + $0x28] sm:$0xff]
      %v255 = vld [vmem:[%s220 + $0x30] sm:$0xff]
      %v256 = vld [vmem:[%s220 + $0x38] sm:$0xff]
      %v257 = vld [vmem:[%s220 + $0x40] sm:$0xff]
      %v258 = vld [vmem:[%s220 + $0x48] sm:$0xff]
      %v259 = vld [vmem:[%s220 + $0x50] sm:$0xff]
      %v260 = vld [vmem:[%s220 + $0x58] sm:$0xff]
      %v261 = vld [vmem:[%s220 + $0x60] sm:$0xff]
      %v262 = vld [vmem:[%s220 + $0x68] sm:$0xff]
      %v263 = vld [vmem:[%s220 + $0x70] sm:$0xff]
      %v264 = vld [vmem:[%s220 + $0x78] sm:$0xff]
      %vm265 = vcmask 48128
      %v267 = vsel %vm265, %v232, 0
      %v270 = vsel %vm265, %v233, 0
      %v273 = vsel %vm265, %v234, 0
      %v276 = vsel %vm265, %v235, 0
      %v279 = vsel %vm265, %v236, 0
      %v282 = vsel %vm265, %v237, 0
      %v285 = vsel %vm265, %v238, 0
      %v288 = vsel %vm265, %v239, 0
      %v291 = vsel %vm265, %v240, 0
      %v294 = vsel %vm265, %v241, 0
      %v297 = vsel %vm265, %v242, 0
      %v300 = vsel %vm265, %v243, 0
      %v303 = vsel %vm265, %v244, 0
      %v306 = vsel %vm265, %v245, 0
      %v309 = vsel %vm265, %v246, 0
      %v312 = vsel %vm265, %v247, 0
      %vm314 = vcmask 1045504
      %v316 = vsel %vm314, %v248, 0
      %318 = vmatprep.subr.mxu0 0.0
      %319 = vmatpush1.msra.mxu0 0.0
      %320 = vmatprep.subr.mxu0 0.0
      %321 = vmatpush1.msra.mxu0 0.0
      %322 = vmatprep.subr.mxu0 0.0
      %323 = vmatpush1.msra.mxu0 0.0
      %324 = vmatprep.subr.mxu0 0.0
      %325 = vmatpush1.msra.mxu0 0.0
      %326 = vmatprep.subr.mxu0 0.0
      %327 = vmatpush1.msra.mxu0 0.0
      %328 = vmatprep.subr.mxu0 0.0
      %329 = vmatpush1.msra.mxu0 0.0
      %330 = vmatprep.subr.mxu0 0.0
      %331 = vmatpush1.msra.mxu0 0.0
      %332 = vmatprep.subr.mxu0 0.0
      %333 = vmatpush1.msra.mxu0 0.0
      %334 = vmatprep.subr.mxu0 0.0
      %335 = vmatpush1.msra.mxu0 0.0
      %336 = vmatprep.subr.mxu0 0.0
      %337 = vmatpush1.msra.mxu0 0.0
      %338 = vmatprep.subr.mxu0 0.0
      %339 = vmatpush1.msra.mxu0 0.0
      %340 = vmatprep.subr.mxu0 0.0
      %341 = vmatpush1.msra.mxu0 0.0
      %342 = vmatprep.subr.mxu0 0.0
      %343 = vmatpush1.msra.mxu0 0.0
      %344 = vmatprep.subr.mxu0 0.0
      %345 = vmatpush1.msra.mxu0 0.0
      %346 = vmatprep.subr.mxu0 0.0
      %347 = vmatpush1.msra.mxu0 0.0
      %348 = vmatprep.subr.mxu0 0.0
      %349 = vmatpush1.msra.mxu0 %v316
      %350 = vmatprep.subr.mxu0 0.0
      %351 = vmatpush2.msra.mxu0 0.0
      %352 = vmatprep.subr.mxu0 0.0
      %353 = vmatpush2.msra.mxu0 0.0
      %354 = vmatprep.subr.mxu0 0.0
      %355 = vmatpush2.msra.mxu0 0.0
      %356 = vmatprep.subr.mxu0 0.0
      %357 = vmatpush2.msra.mxu0 0.0
      %358 = vmatprep.subr.mxu0 0.0
      %359 = vmatpush2.msra.mxu0 0.0
      %360 = vmatprep.subr.mxu0 0.0
      %361 = vmatpush2.msra.mxu0 0.0
      %362 = vmatprep.subr.mxu0 0.0
      %363 = vmatpush2.msra.mxu0 0.0
      %364 = vmatprep.subr.mxu0 0.0
      %365 = vmatpush2.msra.mxu0 0.0
      %366 = vmatprep.subr.mxu0 0.0
      %367 = vmatpush2.msra.mxu0 0.0
      %368 = vmatprep.subr.mxu0 0.0
      %369 = vmatpush2.msra.mxu0 0.0
      %370 = vmatprep.subr.mxu0 0.0
      %371 = vmatpush2.msra.mxu0 0.0
      %372 = vmatprep.subr.mxu0 0.0
      %373 = vmatpush2.msra.mxu0 0.0
      %374 = vmatprep.subr.mxu0 0.0
      %375 = vmatpush2.msra.mxu0 0.0
      %376 = vmatprep.subr.mxu0 0.0
      %377 = vmatpush2.msra.mxu0 0.0
      %378 = vmatprep.subr.mxu0 0.0
      %379 = vmatpush2.msra.mxu0 0.0
      %380 = vmatprep.subr.mxu0 0.0
      %381 = vmatpush2.msra.mxu0 0.0
      %382 = vmatprep.mubr.f32.mxu0 0.0
      %383 = vmatmul.mubr.f32.gmra.mxu0 %v267
      %v384 = vpop.f32.mrf.mxu0
      %v385 = vadd.f32 %v249, %v384
      %v386 = vpop.f32.mrf.mxu0
      %387 = vmatprep.mubr.f32.mxu0 0.0
      %388 = vmatmul.mubr.f32.gmra.mxu0 %v270
      %v389 = vpop.f32.mrf.mxu0
      %v390 = vadd.f32 %v250, %v389
      %v391 = vpop.f32.mrf.mxu0
      %392 = vmatprep.mubr.f32.mxu0 0.0
      %393 = vmatmul.mubr.f32.gmra.mxu0 %v273
      %v394 = vpop.f32.mrf.mxu0
      %v395 = vadd.f32 %v251, %v394
      %v396 = vpop.f32.mrf.mxu0
      %397 = vmatprep.mubr.f32.mxu0 0.0
      %398 = vmatmul.mubr.f32.gmra.mxu0 %v276
      %v399 = vpop.f32.mrf.mxu0
      %v400 = vadd.f32 %v252, %v399
      %v401 = vpop.f32.mrf.mxu0
      %402 = vmatprep.mubr.f32.mxu0 0.0
      %403 = vmatmul.mubr.f32.gmra.mxu0 %v279
      %v404 = vpop.f32.mrf.mxu0
      %v405 = vadd.f32 %v253, %v404
      %v406 = vpop.f32.mrf.mxu0
      %407 = vmatprep.mubr.f32.mxu0 0.0
      %408 = vmatmul.mubr.f32.gmra.mxu0 %v282
      %v409 = vpop.f32.mrf.mxu0
      %v410 = vadd.f32 %v254, %v409
      %v411 = vpop.f32.mrf.mxu0
      %412 = vmatprep.mubr.f32.mxu0 0.0
      %413 = vmatmul.mubr.f32.gmra.mxu0 %v285
      %v414 = vpop.f32.mrf.mxu0
      %v415 = vadd.f32 %v255, %v414
      %v416 = vpop.f32.mrf.mxu0
      %417 = vmatprep.mubr.f32.mxu0 0.0
      %418 = vmatmul.mubr.f32.gmra.mxu0 %v288
      %v419 = vpop.f32.mrf.mxu0
      %v420 = vadd.f32 %v256, %v419
      %v421 = vpop.f32.mrf.mxu0
      %422 = vmatprep.mubr.f32.mxu0 0.0
      %423 = vmatmul.mubr.f32.gmra.mxu0 %v291
      %v424 = vpop.f32.mrf.mxu0
      %v425 = vadd.f32 %v257, %v424
      %v426 = vpop.f32.mrf.mxu0
      %427 = vmatprep.mubr.f32.mxu0 0.0
      %428 = vmatmul.mubr.f32.gmra.mxu0 %v294
      %v429 = vpop.f32.mrf.mxu0
      %v430 = vadd.f32 %v258, %v429
      %v431 = vpop.f32.mrf.mxu0
      %432 = vmatprep.mubr.f32.mxu0 0.0
      %433 = vmatmul.mubr.f32.gmra.mxu0 %v297
      %v434 = vpop.f32.mrf.mxu0
      %v435 = vadd.f32 %v259, %v434
      %v436 = vpop.f32.mrf.mxu0
      %437 = vmatprep.mubr.f32.mxu0 0.0
      %438 = vmatmul.mubr.f32.gmra.mxu0 %v300
      %v439 = vpop.f32.mrf.mxu0
      %v440 = vadd.f32 %v260, %v439
      %v441 = vpop.f32.mrf.mxu0
      %442 = vmatprep.mubr.f32.mxu0 0.0
      %443 = vmatmul.mubr.f32.gmra.mxu0 %v303
      %v444 = vpop.f32.mrf.mxu0
      %v445 = vadd.f32 %v261, %v444
      %v446 = vpop.f32.mrf.mxu0
      %447 = vmatprep.mubr.f32.mxu0 0.0
      %448 = vmatmul.mubr.f32.gmra.mxu0 %v306
      %v449 = vpop.f32.mrf.mxu0
      %v450 = vadd.f32 %v262, %v449
      %v451 = vpop.f32.mrf.mxu0
      %452 = vmatprep.mubr.f32.mxu0 0.0
      %453 = vmatmul.mubr.f32.gmra.mxu0 %v309
      %v454 = vpop.f32.mrf.mxu0
      %v455 = vadd.f32 %v263, %v454
      %v456 = vpop.f32.mrf.mxu0
      %457 = vmatprep.mubr.f32.mxu0 0.0
      %458 = vmatmul.mubr.f32.gmra.mxu0 %v312
      %v459 = vpop.f32.mrf.mxu0
      %v460 = vadd.f32 %v264, %v459
      %v461 = vpop.f32.mrf.mxu0
      %462 = vdwg.mxu0
      %vm463 = vcmask 261120
      %464 = vst.msk [vmem:[%s230] sm:$0xff] %vm463, %v385
      %465 = vst.msk [vmem:[%s230 + $0x8] sm:$0xff] %vm463, %v390
      %466 = vst.msk [vmem:[%s230 + $0x10] sm:$0xff] %vm463, %v395
      %467 = vst.msk [vmem:[%s230 + $0x18] sm:$0xff] %vm463, %v400
      %468 = vst.msk [vmem:[%s230 + $0x20] sm:$0xff] %vm463, %v405
      %469 = vst.msk [vmem:[%s230 + $0x28] sm:$0xff] %vm463, %v410
      %470 = vst.msk [vmem:[%s230 + $0x30] sm:$0xff] %vm463, %v415
      %471 = vst.msk [vmem:[%s230 + $0x38] sm:$0xff] %vm463, %v420
      %472 = vst.msk [vmem:[%s230 + $0x40] sm:$0xff] %vm463, %v425
      %473 = vst.msk [vmem:[%s230 + $0x48] sm:$0xff] %vm463, %v430
      %474 = vst.msk [vmem:[%s230 + $0x50] sm:$0xff] %vm463, %v435
      %475 = vst.msk [vmem:[%s230 + $0x58] sm:$0xff] %vm463, %v440
      %476 = vst.msk [vmem:[%s230 + $0x60] sm:$0xff] %vm463, %v445
      %477 = vst.msk [vmem:[%s230 + $0x68] sm:$0xff] %vm463, %v450
      %478 = vst.msk [vmem:[%s230 + $0x70] sm:$0xff] %vm463, %v455
      %479 = vst.msk [vmem:[%s230 + $0x78] sm:$0xff] %vm463, %v460
      %s480 = smul.u32 16, %s19
      %p481 = scmp.lt.s32.totalorder %s18, 1
      %s482 = scalar_select %p481, %s18, 1
      %p483 = scmp.lt.s32.totalorder %s480, 15
      %s484 = scalar_select %p483, %s480, 15
      %s485 = smul.addr %s482, 16
      %s486 = sadd.s32 %s484, %s485
      %s487 = smul.addr %s486, 8
      %s488 = scalar_lea.vmem %s3, %s487
      // Predicated region
      $region33: #{tpu_custom_call.1} parent=31 // pred_check
        %p489 = pneg %p121
      $region34: #{tpu_custom_call.1} parent=31 // pred_check_branch
        %491 = sbr.rel (%p489) target = $region36
      $region35: #{tpu_custom_call.1} parent=31 // pred_region
        %s492 = smul.u32 16, %s19
      $region36: #{tpu_custom_call.1} parent=31 // pred_fallthru
        _
    $region32: #{tpu_custom_call.1} parent=5 // pred_fallthru
      _
    %p493 = scmp.le.s32.totalorder 2, %s9
    // Predicated region
    $region37: #{tpu_custom_call.1} parent=5 // pred_check
      %p494 = pneg %p493
    $region38: #{tpu_custom_call.1} parent=5 // pred_check_branch
      %496 = sbr.rel (%p494) target = $region40
    $region39: #{tpu_custom_call.1} parent=5 // pred_region
      %s497 = ssub.s32 %s9, 2
      // Predicated region
      $region41: #{tpu_custom_call.1} parent=39 // pred_check
        %p498 = pneg %p127
      $region42: #{tpu_custom_call.1} parent=39 // pred_check_branch
        %500 = sbr.rel (%p498) target = $region44
      $region43: #{tpu_custom_call.1} parent=39 // pred_region
        %s501 = smul.u32 16, %s21
        %p502 = scmp.lt.s32.totalorder %s20, 1
        %s503 = scalar_select %p502, %s20, 1
        %p504 = scmp.lt.s32.totalorder %s501, 15
        %s505 = scalar_select %p504, %s501, 15
        %s506 = smul.addr %s503, 16
        %s507 = sadd.s32 %s505, %s506
        %s508 = smul.addr %s507, 8
        %s509 = scalar_lea.vmem %s3, %s508
      $region44: #{tpu_custom_call.1} parent=39 // pred_fallthru
        _
    $region40: #{tpu_custom_call.1} parent=5 // pred_fallthru
      _
  $region6: #{tpu_custom_call.1} parent=0 // loop_footer
    %s13 = sadd.s32 1, %s9
  $region7: #{tpu_custom_call.1} parent=0 // loop_footer_branch
    %8 = sbr.rel target = $region3
  $region8: #{tpu_custom_call.1} parent=0 // loop_exit
    _

</llo_original>
